<compile_context>
chip_gen: v6e
topology: v6e:2x2x1
jax: 0.10.0
libtpu: 0.0.40
codegen_flags: <defaults>
</compile_context>

<pallas_src>
import functools
import math

import jax
import jax.numpy as jnp
from jax.experimental import pallas as pl
from jax.experimental.pallas import tpu as pltpu

_INV_SQRT2 = 1.0 / math.sqrt(2.0)


# ------------------------------ kernels ------------------------------------


def _ffn_streamed_kernel(x_ref, w1_ref, b1_ref, w2_ref, b2_ref, o_ref, acc_ref):
    # x_ref: (tm, D), w1_ref: (D, tH), b1_ref: (1, tH),
    # w2_ref: (tH, D), b2_ref: (1, D), o_ref: (tm, D), acc_ref: (tm, D) f32
    h_idx = pl.program_id(1)

    @pl.when(h_idx == 0)
    def _init():
        acc_ref[...] = jnp.zeros_like(acc_ref)

    # First linear: native-dtype operands on the MXU, f32 accumulation.
    h = jnp.dot(x_ref[...], w1_ref[...], preferred_element_type=jnp.float32)
    h = h + b1_ref[...].astype(jnp.float32)

    # Exact (erf) GELU in f32 — matches torch.nn.GELU() default.
    g = 0.5 * h * (1.0 + jax.lax.erf(h * _INV_SQRT2))

    # Dropout(p=0.0) -> identity.

    # Cast back to the input dtype so the second matmul runs at native MXU rate;
    # accumulation stays f32 via preferred_element_type + the f32 scratch.
    g = g.astype(x_ref.dtype)
    acc_ref[...] += jnp.dot(g, w2_ref[...], preferred_element_type=jnp.float32)

    @pl.when(h_idx == pl.num_programs(1) - 1)
    def _finalize():
        o_ref[...] = (acc_ref[...] + b2_ref[...].astype(jnp.float32)).astype(o_ref.dtype)


def _ffn_resident_kernel(x_ref, w1_ref, b1_ref, w2_ref, b2_ref, o_ref):
    # Weights fully resident in VMEM; no hidden-axis accumulation needed.
    h = jnp.dot(x_ref[...], w1_ref[...], preferred_element_type=jnp.float32)
    h = h + b1_ref[...].astype(jnp.float32)
    g = 0.5 * h * (1.0 + jax.lax.erf(h * _INV_SQRT2))
    g = g.astype(x_ref.dtype)
    o = jnp.dot(g, w2_ref[...], preferred_element_type=jnp.float32)
    o_ref[...] = (o + b2_ref[...].astype(jnp.float32)).astype(o_ref.dtype)


# --------------------------- tiling heuristics ------------------------------


def _round_up(a, b):
    return ((a + b - 1) // b) * b


@functools.lru_cache(maxsize=1)
def _tpu_config():
    """(tm_target, th_target, th_step, vmem_limit_bytes) for the local TPU generation."""
    kind = ""
    try:
        kind = jax.devices()[0].device_kind.lower()
    except Exception:
        pass
    cap = None
    try:
        cap = getattr(pltpu.get_tpu_info(), "vmem_capacity_bytes", None)
    except Exception:
        cap = None
    if not cap:
        cap = 128 * 1024 * 1024 if ("v5" in kind or "v6" in kind) else 64 * 1024 * 1024
    # Never request the whole physical VMEM — leave headroom for Mosaic internal scratch.
    vmem_limit = max(32 * 1024 * 1024, min(cap - 12 * 1024 * 1024, int(cap * 0.85)))
    if "v6" in kind:      # ~918 TF/s / ~1.4 TB/s -> tm >= ~656 for MXU-bound weight streaming
        tm_t, th_t, th_step = 1024, 512, 256
    elif "v5" in kind:    # ~197 TF/s / ~0.82 TB/s -> tm >= ~240; 4x128 MXU -> 128 stepping ok
        tm_t, th_t, th_step = 512, 512, 128
    else:                 # v7x (64 MiB VMEM, 2 TCs, ~311 flops/byte) and unknown chips
        tm_t, th_t, th_step = 512, 256, 256
    return tm_t, th_t, th_step, vmem_limit


def _pick_hidden_tile(H, target, step):
    """Lane/MXU-aligned divisor of H that is <= target, else H (full)."""
    if H <= target:
        return H
    for s in (step, 128):
        t = (min(target, H) // s) * s
        while t >= s:
            if H % t == 0:
                return t
            t -= s
    return H


def _pick_row_tile(M, target):
    """Row tile (multiple of 8): trade padded-row compute against weight re-streaming.

    Cost model (rows): padded_rows + num_row_tiles * target, where `target` is roughly
    the tile size at which per-tile weight re-streaming balances MXU compute.
    """
    M8 = _round_up(M, 8)
    if M8 <= target:
        return M8
    cands = set()
    if M8 <= target * 5 // 4:          # slight over-shoot avoids both padding & re-streaming
        cands.add(M8)
    for t in range(256, target + 1, 256):
        cands.add(t)
    cands.add(_round_up(target, 8))
    best_t, best_cost = None, None
    for t in sorted(cands):
        cost = _round_up(M, t) + (-(-M // t)) * target
        if best_cost is None or cost < best_cost:
            best_t, best_cost = t, cost
    return best_t


def _streamed_vmem_bytes(tm, th, D, itemsize):
    return (2 * tm * D * itemsize        # x row tile, double-buffered
            + 2 * tm * D * itemsize      # out row tile, double-buffered
            + 2 * D * th * itemsize      # W1 column tile, double-buffered
            + 2 * th * D * itemsize      # W2 row tile, double-buffered
            + tm * D * 4                 # f32 accumulator scratch
            + tm * th * (4 + itemsize)   # h (f32) + GELU output (native) temporaries
            + 2 * (th + D) * itemsize)   # bias tiles


def _resident_vmem_bytes(tm, D, H, itemsize):
    return (2 * tm * D * itemsize        # x row tile
            + 2 * tm * D * itemsize      # out row tile
            + 2 * D * H * itemsize       # W1 (conservatively assume 2 buffers)
            + 2 * H * D * itemsize       # W2
            + tm * H * (4 + itemsize)    # h (f32) + GELU output (native) temporaries
            + 2 * (H + D) * itemsize)    # biases


# ------------------------------- wrapper ------------------------------------


def ffn_pallas(x, w1, b1, w2, b2, *, tm=None, th=None, force_streamed=False):
    """x: (batch, seq, dim). w1: (dim, hidden), b1: (1, hidden), w2: (hidden, dim),
    b2: (1, dim). Returns (batch, seq, dim)."""
    B, S, D = x.shape
    H = w1.shape[1]
    M = B * S
    x2 = x.reshape(M, D)
    itemsize = jnp.dtype(x.dtype).itemsize

    tm_t, th_t, th_step, vmem_limit = _tpu_config()
    if tm is not None:
        tm_t = max(8, int(tm))
    if th is not None:
        th_t = max(128, int(th))
    vmem_budget = int(vmem_limit * 0.9)

    th_ = _pick_hidden_tile(H, th_t, th_step)
    tm_ = _pick_row_tile(M, tm_t)

    # Megacore / multi-TensorCore: keep the "parallel" axis >= 2 steps when M allows.
    M8 = _round_up(M, 8)
    if M8 > 8 and _round_up(M, tm_) // tm_ < 2:
        tm_ = _round_up((M8 + 1) // 2, 8)

    # Shrink the row tile until the streamed working set fits the scoped VMEM budget.
    while tm_ > 8 and _streamed_vmem_bytes(tm_, th_, D, itemsize) > vmem_budget:
        tm_ = max(8, _round_up(tm_ // 2, 8))

    M_pad = _round_up(M, tm_)
    if M_pad != M:
        x2 = jnp.pad(x2, ((0, M_pad - M), (0, 0)))
    grid_m = M_pad // tm_

    use_resident = (not force_streamed) and (
        _resident_vmem_bytes(tm_, D, H, itemsize) <= vmem_budget)

    # Cost estimate: on the streamed path W1/W2 (and biases) are re-read per row tile.
    w_itemsize = jnp.dtype(w1.dtype).itemsize
    weight_reads = 1 if use_resident else grid_m
    flops = 4 * M_pad * D * H                      # two matmuls, 2*M*D*H each
    transcendentals = M_pad * H                    # one erf per hidden activation
    bytes_accessed = (
        2 * M_pad * D * itemsize                   # x read + out write
        + weight_reads * (w1.size + w2.size + b1.size + b2.size) * w_itemsize)
    cost = pl.CostEstimate(flops=flops, transcendentals=transcendentals,
                           bytes_accessed=bytes_accessed)

    if use_resident:
        out = pl.pallas_call(
            _ffn_resident_kernel,
            out_shape=jax.ShapeDtypeStruct((M_pad, D), x.dtype),
            grid_spec=pltpu.PrefetchScalarGridSpec(
                num_scalar_prefetch=0,
                grid=(grid_m,),
                in_specs=[
                    pl.BlockSpec((tm_, D), lambda i: (i, 0)),   # x row tile
                    pl.BlockSpec((D, H), lambda i: (0, 0)),     # W1 resident (DMA once)
                    pl.BlockSpec((1, H), lambda i: (0, 0)),     # b1
                    pl.BlockSpec((H, D), lambda i: (0, 0)),     # W2 resident (DMA once)
                    pl.BlockSpec((1, D), lambda i: (0, 0)),     # b2
                ],
                out_specs=pl.BlockSpec((tm_, D), lambda i: (i, 0)),
            ),
            compiler_params=pltpu.CompilerParams(
                dimension_semantics=("parallel",),
                vmem_limit_bytes=vmem_limit,
            ),
            cost_estimate=cost,
        )(x2, w1, b1, w2, b2)
    else:
        grid_h = H // th_
        out = pl.pallas_call(
            _ffn_streamed_kernel,
            out_shape=jax.ShapeDtypeStruct((M_pad, D), x.dtype),
            grid_spec=pltpu.PrefetchScalarGridSpec(
                num_scalar_prefetch=0,
                grid=(grid_m, grid_h),
                in_specs=[
                    pl.BlockSpec((tm_, D), lambda i, h: (i, 0)),  # x (constant over h)
                    pl.BlockSpec((D, th_), lambda i, h: (0, h)),  # W1 column tile
                    pl.BlockSpec((1, th_), lambda i, h: (0, h)),  # b1 tile
                    pl.BlockSpec((th_, D), lambda i, h: (h, 0)),  # W2 row tile
                    pl.BlockSpec((1, D), lambda i, h: (0, 0)),    # b2
                ],
                out_specs=pl.BlockSpec((tm_, D), lambda i, h: (i, 0)),
                scratch_shapes=[pltpu.VMEM((tm_, D), jnp.float32)],
            ),
            compiler_params=pltpu.CompilerParams(
                dimension_semantics=("parallel", "arbitrary"),
                vmem_limit_bytes=vmem_limit,
            ),
            cost_estimate=cost,
        )(x2, w1, b1, w2, b2)

    return out[:M].reshape(B, S, D)


# ------------------------------ test helpers --------------------------------


def init_ffn_params(key, dim, hidden_dim, dtype=jnp.float32):
    """Deterministic init mimicking nn.Linear shapes (stored transposed: (in, out))."""
    k1, k2, k3, k4 = jax.random.split(key, 4)
    lim1 = 1.0 / math.sqrt(dim)
    lim2 = 1.0 / math.sqrt(hidden_dim)
    w1 = jax.random.uniform(k1, (dim, hidden_dim), dtype, -lim1, lim1)
    b1 = jax.random.uniform(k2, (1, hidden_dim), dtype, -lim1, lim1)
    w2 = jax.random.uniform(k3, (hidden_dim, dim), dtype, -lim2, lim2)
    b2 = jax.random.uniform(k4, (1, dim), dtype, -lim2, lim2)
    return w1, b1, w2, b2


def _ffn_reference(x, w1, b1, w2, b2):
    B, S, D = x.shape
    h = x.reshape(-1, D) @ w1 + b1
    g = 0.5 * h * (1.0 + jax.lax.erf(h * _INV_SQRT2))
    return (g @ w2 + b2).reshape(B, S, D)


if __name__ == "__main__":
    key = jax.random.PRNGKey(0)
    kx1, kp1, kx2, kp2 = jax.random.split(key, 4)

    # Small shape: exercises the resident-weights fast path (weights DMA'd once).
    batch, seq, dim, hidden = 2, 8, 32, 64
    x = jax.random.normal(kx1, (batch, seq, dim), jnp.float32)
    w1, b1, w2, b2 = init_ffn_params(kp1, dim, hidden)
    y = jax.block_until_ready(ffn_pallas(x, w1, b1, w2, b2))
    y_ref = _ffn_reference(x, w1, b1, w2, b2)
    assert jnp.allclose(y, y_ref, atol=1e-5, rtol=1e-5), "resident-path mismatch"

    # Slightly larger, awkward-M shape with forced streaming: exercises the hidden-axis
    # accumulator (init/finalize), weight streaming, and row-padding paths.
    batch2, seq2, dim2, hidden2 = 2, 100, 128, 512
    x2 = jax.random.normal(kx2, (batch2, seq2, dim2), jnp.float32)
    w1b, b1b, w2b, b2b = init_ffn_params(kp2, dim2, hidden2)
    y2 = jax.block_until_ready(
        ffn_pallas(x2, w1b, b1b, w2b, b2b, tm=64, th=128, force_streamed=True))
    y2_ref = _ffn_reference(x2, w1b, b1b, w2b, b2b)
    assert jnp.allclose(y2, y2_ref, atol=5e-2, rtol=5e-2), "streamed-path mismatch"

    print("KERNEL_OK")
</pallas_src>

<mosaic_0001>
module attributes {stable_mosaic.version = 11 : i64} {
  func.func @_ffn_resident_kernel(%arg0: i32, %arg1: memref<8x32xf32, #tpu.memory_space<vmem>>, %arg2: memref<32x64xf32, #tpu.memory_space<vmem>>, %arg3: memref<1x64xf32, #tpu.memory_space<vmem>>, %arg4: memref<64x32xf32, #tpu.memory_space<vmem>>, %arg5: memref<1x32xf32, #tpu.memory_space<vmem>>, %arg6: memref<8x32xf32, #tpu.memory_space<vmem>>) attributes {dimension_semantics = [#tpu.dimension_semantics<parallel>], iteration_bounds = array<i64: 2>, scalar_prefetch = 0 : i64, scratch_operands = 0 : i64, tpu.core_type = #tpu.core_type<tc>, window_params = [{transform_indices = @transform_0, window_bounds = array<i64: 8, 32>}, {pipeline_mode = #tpu.pipeline_mode<synchronous>, transform_indices = @transform_1, window_bounds = array<i64: 32, 64>}, {pipeline_mode = #tpu.pipeline_mode<synchronous>, transform_indices = @transform_2, window_bounds = array<i64: 1, 64>}, {pipeline_mode = #tpu.pipeline_mode<synchronous>, transform_indices = @transform_3, window_bounds = array<i64: 64, 32>}, {pipeline_mode = #tpu.pipeline_mode<synchronous>, transform_indices = @transform_4, window_bounds = array<i64: 1, 32>}, {transform_indices = @transform_5, window_bounds = array<i64: 8, 32>}]} {
    %c0 = arith.constant 0 : index
    %c0_0 = arith.constant 0 : index
    %0 = vector.load %arg1[%c0, %c0_0] : memref<8x32xf32, #tpu.memory_space<vmem>>, vector<8x32xf32>
    %c0_1 = arith.constant 0 : index
    %c0_2 = arith.constant 0 : index
    %1 = vector.load %arg2[%c0_1, %c0_2] : memref<32x64xf32, #tpu.memory_space<vmem>>, vector<32x64xf32>
    %cst = arith.constant dense<0.000000e+00> : vector<8x64xf32>
    %2 = tpu.matmul %0, %1, %cst {dimension_numbers = #tpu.dot_dimension_numbers<[1], [0], [0], [1], [0, 0, 1, 1], [], []>} : vector<8x32xf32>, vector<32x64xf32>, vector<8x64xf32> -> vector<8x64xf32>
    %c0_3 = arith.constant 0 : index
    %c0_4 = arith.constant 0 : index
    %3 = vector.load %arg3[%c0_3, %c0_4] : memref<1x64xf32, #tpu.memory_space<vmem>>, vector<1x64xf32>
    %4 = vector.broadcast %3 : vector<1x64xf32> to vector<8x64xf32>
    %5 = arith.addf %2, %4 : vector<8x64xf32>
    %cst_5 = arith.constant 5.000000e-01 : f32
    %6 = vector.broadcast %cst_5 : f32 to vector<8x64xf32>
    %7 = arith.mulf %6, %5 : vector<8x64xf32>
    %cst_6 = arith.constant 0.707106769 : f32
    %8 = vector.broadcast %cst_6 : f32 to vector<8x64xf32>
    %9 = arith.mulf %5, %8 : vector<8x64xf32>
    %10 = math.erf %9 : vector<8x64xf32>
    %cst_7 = arith.constant 1.000000e+00 : f32
    %11 = vector.broadcast %cst_7 : f32 to vector<8x64xf32>
    %12 = arith.addf %11, %10 : vector<8x64xf32>
    %13 = arith.mulf %7, %12 : vector<8x64xf32>
    %c0_8 = arith.constant 0 : index
    %c0_9 = arith.constant 0 : index
    %14 = vector.load %arg4[%c0_8, %c0_9] : memref<64x32xf32, #tpu.memory_space<vmem>>, vector<64x32xf32>
    %cst_10 = arith.constant dense<0.000000e+00> : vector<8x32xf32>
    %15 = tpu.matmul %13, %14, %cst_10 {dimension_numbers = #tpu.dot_dimension_numbers<[1], [0], [0], [1], [0, 0, 1, 1], [], []>} : vector<8x64xf32>, vector<64x32xf32>, vector<8x32xf32> -> vector<8x32xf32>
    %c0_11 = arith.constant 0 : index
    %c0_12 = arith.constant 0 : index
    %16 = vector.load %arg5[%c0_11, %c0_12] : memref<1x32xf32, #tpu.memory_space<vmem>>, vector<1x32xf32>
    %17 = vector.broadcast %16 : vector<1x32xf32> to vector<8x32xf32>
    %18 = arith.addf %15, %17 : vector<8x32xf32>
    %c0_13 = arith.constant 0 : index
    %c0_14 = arith.constant 0 : index
    %19 = vector.load %arg6[%c0_13, %c0_14] : memref<8x32xf32, #tpu.memory_space<vmem>>, vector<8x32xf32>
    tpu.vector_store %arg6[%c0_13, %c0_14], %18 {strides = array<i32>} : memref<8x32xf32, #tpu.memory_space<vmem>>, vector<8x32xf32>,
    return
  }
  func.func @transform_0(%arg0: i32) -> (i32, i32) {
    %c0_i32 = arith.constant 0 : i32
    %c0_i32_0 = arith.constant 0 : i32
    return %arg0, %c0_i32 : i32, i32
  }
  func.func @transform_1(%arg0: i32) -> (i32, i32) {
    %c0_i32 = arith.constant 0 : i32
    %c0_i32_0 = arith.constant 0 : i32
    %c0_i32_1 = arith.constant 0 : i32
    return %c0_i32, %c0_i32_0 : i32, i32
  }
  func.func @transform_2(%arg0: i32) -> (i32, i32) {
    %c0_i32 = arith.constant 0 : i32
    %c0_i32_0 = arith.constant 0 : i32
    %c0_i32_1 = arith.constant 0 : i32
    return %c0_i32, %c0_i32_0 : i32, i32
  }
  func.func @transform_3(%arg0: i32) -> (i32, i32) {
    %c0_i32 = arith.constant 0 : i32
    %c0_i32_0 = arith.constant 0 : i32
    %c0_i32_1 = arith.constant 0 : i32
    return %c0_i32, %c0_i32_0 : i32, i32
  }
  func.func @transform_4(%arg0: i32) -> (i32, i32) {
    %c0_i32 = arith.constant 0 : i32
    %c0_i32_0 = arith.constant 0 : i32
    %c0_i32_1 = arith.constant 0 : i32
    return %c0_i32, %c0_i32_0 : i32, i32
  }
  func.func @transform_5(%arg0: i32) -> (i32, i32) {
    %c0_i32 = arith.constant 0 : i32
    %c0_i32_0 = arith.constant 0 : i32
    return %arg0, %c0_i32 : i32, i32
  }
}

</mosaic_0001>

<llo_original>
// kernel: tpu_custom_call.1
$region0: #{tpu_custom_call.1}
  #allocation0 [shape = 'u32[]', space=smem, size = 0x4, offset = 0x4, fixed_abs, tag = 'smem constant byte address 0x4 - core index']
  #allocation1 [shape = 'u32[144,128]{1,0:T(1,128)}', space=vmem, size = 0x12000, scoped, tag = 'internal scratch']
  %s0 = inlined_call_operand.vmem [shape: f32[16,32], index: 0, kind: input, shape index: {}]
  %s1 = inlined_call_operand.vmem [shape: f32[32,64], index: 1, kind: input, shape index: {}]
  %s2 = inlined_call_operand.vmem [shape: f32[1,64], index: 2, kind: input, shape index: {}]
  %s3 = inlined_call_operand.vmem [shape: f32[64,32], index: 3, kind: input, shape index: {}]
  %s4 = inlined_call_operand.vmem [shape: f32[1,32], index: 4, kind: input, shape index: {}]
  %s5 = inlined_call_operand.hbm [shape: f32[16,32], index: 5, kind: output, shape index: {}]
  %s6 = sld [smem:[#allocation0]]
  $region53: #{tpu_custom_call.1} parent=0
    _
  %s8 = ssub.s32 1, %s6
  %s9 = scalar_select 0, %s8, %s6
  $region1: #{tpu_custom_call.1} parent=0
    #allocation2 [shape = 'u8[8192]{0}', space=vmem, size = 0x2000, scoped, tag = 'output window, operand 0']
    #allocation3 [shape = 's32[2]{0}', space=sflag, size = 0x8, scoped, tag = 'scoped memory for tpu_custom_call.1']
    %10 = vsyncpa [#allocation3], 0
    %s11 = scalar_lea.sflag [#allocation3], 1
    %12 = vsyncpa %s11, 0
    loop: start=0, step=1, limit=4
    $region2: #{tpu_custom_call.1} parent=1 // loop_pre_header
      _
    $region3: #{tpu_custom_call.1} parent=1 // loop_header
      %s14 = sphi 0, %s18
      %p15 = scmp.ge.s32.totalorder %s14, 4
      %s24 = sphi 0, %s26
      %s27 = sphi 0, %s24
      %s28 = sphi 0, %s27
      %s44 = sphi 0, %s28
      %s48 = sphi 0, %s48
      %s50 = sphi 0, %s48
      %s51 = sphi 0, %s50
      %s65 = sphi 0, %s51
      %s69 = sphi 0, %s69
      %s71 = sphi 0, %s69
      %s72 = sphi 0, %s71
      %s86 = sphi 0, %s72
      %s90 = sphi 0, %s90
      %s92 = sphi 0, %s90
      %s93 = sphi 0, %s92
      %s107 = sphi 0, %s93
      %s111 = sphi 0, %s111
      %s113 = sphi 0, %s111
      %s114 = sphi 0, %s113
      %s128 = sphi 0, %s114
      %s134 = sphi 0, %s136
      %s137 = sphi 0, %s134
      %s138 = sphi 0, %s137
      %s154 = sphi 0, %s138
    $region4: #{tpu_custom_call.1} parent=1 // loop_header_branch
      %17 = sbr.rel (%p15) target = $region8
    $region5: #{tpu_custom_call.1} parent=1 // loop_body
      %s19 = ssub.s32 %s14, 1
      %s20 = ssub.s32 %s14, 2
      %s21 = sadd.s32 %s14, 1
      %s22 = ssub.s32 %s14, %s21
      %p23 = scmp.eq.s32.totalorder %s22, 0
      %s25 = sadd.s32 %s24, 1
      %s26 = scalar_select %p23, %s24, %s25
      %p29 = pneg %p23
      %p30 = scmp.eq.s32.totalorder %s14, 1
      %p31 = por %p29, %p30
      %p32 = scmp.ne.s32.totalorder %s24, %s27
      %p33 = scmp.eq.s32.totalorder %s14, 0
      %p34 = por %p32, %p33
      %p35 = scmp.ne.s32.totalorder %s24, %s27
      %p36 = scmp.eq.s32.totalorder %s19, 1
      %p37 = por %p35, %p36
      %p38 = scmp.ne.s32.totalorder %s27, %s28
      %p39 = scmp.eq.s32.totalorder %s19, 0
      %p40 = por %p38, %p39
      %p41 = scmp.ne.s32.totalorder %s27, %s28
      %p42 = scmp.eq.s32.totalorder %s20, 1
      %p43 = por %p41, %p42
      %p45 = scmp.ne.s32.totalorder %s28, %s44
      %p46 = scmp.eq.s32.totalorder %s20, 0
      %p47 = por %p45, %p46
      %s49 = sadd.s32 %s48, 1
      %p52 = scmp.eq.s32.totalorder %s14, 1
      %p53 = scmp.ne.s32.totalorder %s48, %s50
      %p54 = scmp.eq.s32.totalorder %s14, 0
      %p55 = por %p53, %p54
      %p56 = scmp.ne.s32.totalorder %s48, %s50
      %p57 = scmp.eq.s32.totalorder %s19, 1
      %p58 = por %p56, %p57
      %p59 = scmp.ne.s32.totalorder %s50, %s51
      %p60 = scmp.eq.s32.totalorder %s19, 0
      %p61 = por %p59, %p60
      %p62 = scmp.ne.s32.totalorder %s50, %s51
      %p63 = scmp.eq.s32.totalorder %s20, 1
      %p64 = por %p62, %p63
      %p66 = scmp.ne.s32.totalorder %s51, %s65
      %p67 = scmp.eq.s32.totalorder %s20, 0
      %p68 = por %p66, %p67
      %s70 = sadd.s32 %s69, 1
      %p73 = scmp.eq.s32.totalorder %s14, 1
      %p74 = scmp.ne.s32.totalorder %s69, %s71
      %p75 = scmp.eq.s32.totalorder %s14, 0
      %p76 = por %p74, %p75
      %p77 = scmp.ne.s32.totalorder %s69, %s71
      %p78 = scmp.eq.s32.totalorder %s19, 1
      %p79 = por %p77, %p78
      %p80 = scmp.ne.s32.totalorder %s71, %s72
      %p81 = scmp.eq.s32.totalorder %s19, 0
      %p82 = por %p80, %p81
      %p83 = scmp.ne.s32.totalorder %s71, %s72
      %p84 = scmp.eq.s32.totalorder %s20, 1
      %p85 = por %p83, %p84
      %p87 = scmp.ne.s32.totalorder %s72, %s86
      %p88 = scmp.eq.s32.totalorder %s20, 0
      %p89 = por %p87, %p88
      %s91 = sadd.s32 %s90, 1
      %p94 = scmp.eq.s32.totalorder %s14, 1
      %p95 = scmp.ne.s32.totalorder %s90, %s92
      %p96 = scmp.eq.s32.totalorder %s14, 0
      %p97 = por %p95, %p96
      %p98 = scmp.ne.s32.totalorder %s90, %s92
      %p99 = scmp.eq.s32.totalorder %s19, 1
      %p100 = por %p98, %p99
      %p101 = scmp.ne.s32.totalorder %s92, %s93
      %p102 = scmp.eq.s32.totalorder %s19, 0
      %p103 = por %p101, %p102
      %p104 = scmp.ne.s32.totalorder %s92, %s93
      %p105 = scmp.eq.s32.totalorder %s20, 1
      %p106 = por %p104, %p105
      %p108 = scmp.ne.s32.totalorder %s93, %s107
      %p109 = scmp.eq.s32.totalorder %s20, 0
      %p110 = por %p108, %p109
      %s112 = sadd.s32 %s111, 1
      %p115 = scmp.eq.s32.totalorder %s14, 1
      %p116 = scmp.ne.s32.totalorder %s111, %s113
      %p117 = scmp.eq.s32.totalorder %s14, 0
      %p118 = por %p116, %p117
      %p119 = scmp.ne.s32.totalorder %s111, %s113
      %p120 = scmp.eq.s32.totalorder %s19, 1
      %p121 = por %p119, %p120
      %p122 = scmp.ne.s32.totalorder %s113, %s114
      %p123 = scmp.eq.s32.totalorder %s19, 0
      %p124 = por %p122, %p123
      %p125 = scmp.ne.s32.totalorder %s113, %s114
      %p126 = scmp.eq.s32.totalorder %s20, 1
      %p127 = por %p125, %p126
      %p129 = scmp.ne.s32.totalorder %s114, %s128
      %p130 = scmp.eq.s32.totalorder %s20, 0
      %p131 = por %p129, %p130
      %s132 = ssub.s32 %s14, %s21
      %p133 = scmp.eq.s32.totalorder %s132, 0
      %s135 = sadd.s32 %s134, 1
      %s136 = scalar_select %p133, %s134, %s135
      %p139 = pneg %p133
      %p140 = scmp.eq.s32.totalorder %s14, 1
      %p141 = por %p139, %p140
      %p142 = scmp.ne.s32.totalorder %s134, %s137
      %p143 = scmp.eq.s32.totalorder %s14, 0
      %p144 = por %p142, %p143
      %p145 = scmp.ne.s32.totalorder %s134, %s137
      %p146 = scmp.eq.s32.totalorder %s19, 1
      %p147 = por %p145, %p146
      %p148 = scmp.ne.s32.totalorder %s137, %s138
      %p149 = scmp.eq.s32.totalorder %s19, 0
      %p150 = por %p148, %p149
      %p151 = scmp.ne.s32.totalorder %s137, %s138
      %p152 = scmp.eq.s32.totalorder %s20, 1
      %p153 = por %p151, %p152
      %p155 = scmp.ne.s32.totalorder %s138, %s154
      %p156 = scmp.eq.s32.totalorder %s20, 0
      %p157 = por %p155, %p156
      %p158 = scmp.le.s32.totalorder 1, %s14
      %p159 = scmp.lt.s32.totalorder %s14, 3
      %p160 = pnand %p158, %p159
      %p161 = pneg %p160
      // Predicated region
      $region9: #{tpu_custom_call.1} parent=5 // pred_check
        _
      $region10: #{tpu_custom_call.1} parent=5 // pred_check_branch
        %163 = sbr.rel (%p160) target = $region12
      $region11: #{tpu_custom_call.1} parent=5 // pred_region
        %s164 = ssub.s32 %s14, 1
        // Predicated region
        $region13: #{tpu_custom_call.1} parent=11 // pred_check
          %p165 = pneg %p61
        $region14: #{tpu_custom_call.1} parent=11 // pred_check_branch
          %167 = sbr.rel (%p165) target = $region16
        $region15: #{tpu_custom_call.1} parent=11 // pred_region
          _
        $region16: #{tpu_custom_call.1} parent=11 // pred_fallthru
          _
        // Predicated region
        $region17: #{tpu_custom_call.1} parent=11 // pred_check
          %p168 = pneg %p82
        $region18: #{tpu_custom_call.1} parent=11 // pred_check_branch
          %170 = sbr.rel (%p168) target = $region20
        $region19: #{tpu_custom_call.1} parent=11 // pred_region
          _
        $region20: #{tpu_custom_call.1} parent=11 // pred_fallthru
          _
        // Predicated region
        $region21: #{tpu_custom_call.1} parent=11 // pred_check
          %p171 = pneg %p103
        $region22: #{tpu_custom_call.1} parent=11 // pred_check_branch
          %173 = sbr.rel (%p171) target = $region24
        $region23: #{tpu_custom_call.1} parent=11 // pred_region
          _
        $region24: #{tpu_custom_call.1} parent=11 // pred_fallthru
          _
        // Predicated region
        $region25: #{tpu_custom_call.1} parent=11 // pred_check
          %p174 = pneg %p124
        $region26: #{tpu_custom_call.1} parent=11 // pred_check_branch
          %176 = sbr.rel (%p174) target = $region28
        $region27: #{tpu_custom_call.1} parent=11 // pred_region
          _
        $region28: #{tpu_custom_call.1} parent=11 // pred_fallthru
          _
      $region12: #{tpu_custom_call.1} parent=5 // pred_fallthru
        _
      %p177 = scmp.lt.s32.totalorder %s14, 2
      // Predicated region
      $region29: #{tpu_custom_call.1} parent=5 // pred_check
        %p178 = pneg %p177
      $region30: #{tpu_custom_call.1} parent=5 // pred_check_branch
        %180 = sbr.rel (%p178) target = $region32
      $region31: #{tpu_custom_call.1} parent=5 // pred_region
        // Predicated region
        $region33: #{tpu_custom_call.1} parent=31 // pred_check
          %p181 = pneg %p34
        $region34: #{tpu_custom_call.1} parent=31 // pred_check_branch
          %183 = sbr.rel (%p181) target = $region36
        $region35: #{tpu_custom_call.1} parent=31 // pred_region
          %p184 = scmp.lt.s32.totalorder %s14, 1
          %s185 = scalar_select %p184, %s14, 1
          %s186 = smul.addr %s185, 8
          %s187 = scalar_lea.vmem %s0, %s186
        $region36: #{tpu_custom_call.1} parent=31 // pred_fallthru
          _
      $region32: #{tpu_custom_call.1} parent=5 // pred_fallthru
        _
      %p188 = scmp.le.s32.totalorder 1, %s14
      %p189 = scmp.lt.s32.totalorder %s14, 3
      %p190 = pnand %p188, %p189
      %p191 = pneg %p190
      // Predicated region
      $region37: #{tpu_custom_call.1} parent=5 // pred_check
        _
      $region38: #{tpu_custom_call.1} parent=5 // pred_check_branch
        %193 = sbr.rel (%p190) target = $region40
      $region39: #{tpu_custom_call.1} parent=5 // pred_region
        %s194 = ssub.s32 %s14, 1
        %p195 = scmp.lt.s32.totalorder %s19, 1
        %s196 = scalar_select %p195, %s19, 1
        %s197 = smul.addr %s196, 8
        %s198 = scalar_lea.vmem %s0, %s197
        %p199 = pneg %p40
        %p200 = pneg %p37
        %p201 = pneg %p61
        %p202 = pneg %p58
        %p203 = pneg %p82
        %p204 = pneg %p79
        %p205 = pneg %p103
        %p206 = pneg %p100
        %p207 = pneg %p124
        %p208 = pneg %p121
        %p209 = pneg %p150
        %p210 = pneg %p147
        %s211 = sand.u32 %s137, 1
        %s212 = scalar_lea.sflag [#allocation3], %s211
        %s213 = sand.u32 %s137, 1
        %s214 = smul.addr %s213, 8
        %s215 = scalar_lea.vmem [#allocation2], %s214
        %p216 = scmp.lt.s32.totalorder %s19, 1
        %s217 = scalar_select %p216, %s19, 1
        %s218 = smul.addr %s217, 8
        %s219 = scalar_lea.vmem %s0, %s218
        %v220 = vld [vmem:[%s219] sm:$0xff]
        %v221 = vld [vmem:[%s1] sm:$0xff]
        %v222 = vld [vmem:[%s1 + $0x8] sm:$0xff]
        %v223 = vld [vmem:[%s1 + $0x10] sm:$0xff]
        %v224 = vld [vmem:[%s1 + $0x18] sm:$0xff]
        %v225 = vld [vmem:[%s2] sm:$0x1]
        %v227 = vlaneseq
        %v228 = vshrl.u32 %v227, 7
        %v229 = vsub.s32 0, %v228
        %v230 = vrot.slane %v225, %v229
        %vm232 = vcmask 261120
        %v234 = vsel %vm232, %v220, 0
        %236 = vmatprep.subr.mxu0 0.0
        %237 = vmatpush1.msra.mxu0 0.0
        %238 = vmatprep.subr.mxu0 0.0
        %239 = vmatpush1.msra.mxu0 0.0
        %240 = vmatprep.subr.mxu0 0.0
        %241 = vmatpush1.msra.mxu0 0.0
        %242 = vmatprep.subr.mxu0 0.0
        %243 = vmatpush1.msra.mxu0 0.0
        %244 = vmatprep.subr.mxu0 0.0
        %245 = vmatpush1.msra.mxu0 0.0
        %246 = vmatprep.subr.mxu0 0.0
        %247 = vmatpush1.msra.mxu0 0.0
        %248 = vmatprep.subr.mxu0 0.0
        %249 = vmatpush1.msra.mxu0 0.0
        %250 = vmatprep.subr.mxu0 0.0
        %251 = vmatpush1.msra.mxu0 0.0
        %252 = vmatprep.subr.mxu0 0.0
        %253 = vmatpush1.msra.mxu0 0.0
        %254 = vmatprep.subr.mxu0 0.0
        %255 = vmatpush1.msra.mxu0 0.0
        %256 = vmatprep.subr.mxu0 0.0
        %257 = vmatpush1.msra.mxu0 0.0
        %258 = vmatprep.subr.mxu0 0.0
        %259 = vmatpush1.msra.mxu0 0.0
        %260 = vmatprep.subr.mxu0 0.0
        %261 = vmatpush1.msra.mxu0 %v224
        %262 = vmatprep.subr.mxu0 0.0
        %263 = vmatpush1.msra.mxu0 %v223
        %264 = vmatprep.subr.mxu0 0.0
        %265 = vmatpush1.msra.mxu0 %v222
        %266 = vmatprep.subr.mxu0 0.0
        %267 = vmatpush1.msra.mxu0 %v221
        %268 = vmatprep.subr.mxu0 0.0
        %269 = vmatpush2.msra.mxu0 0.0
        %270 = vmatprep.subr.mxu0 0.0
        %271 = vmatpush2.msra.mxu0 0.0
        %272 = vmatprep.subr.mxu0 0.0
        %273 = vmatpush2.msra.mxu0 0.0
        %274 = vmatprep.subr.mxu0 0.0
        %275 = vmatpush2.msra.mxu0 0.0
        %276 = vmatprep.subr.mxu0 0.0
        %277 = vmatpush2.msra.mxu0 0.0
        %278 = vmatprep.subr.mxu0 0.0
        %279 = vmatpush2.msra.mxu0 0.0
        %280 = vmatprep.subr.mxu0 0.0
        %281 = vmatpush2.msra.mxu0 0.0
        %282 = vmatprep.subr.mxu0 0.0
        %283 = vmatpush2.msra.mxu0 0.0
        %284 = vmatprep.subr.mxu0 0.0
        %285 = vmatpush2.msra.mxu0 0.0
        %286 = vmatprep.subr.mxu0 0.0
        %287 = vmatpush2.msra.mxu0 0.0
        %288 = vmatprep.subr.mxu0 0.0
        %289 = vmatpush2.msra.mxu0 0.0
        %290 = vmatprep.subr.mxu0 0.0
        %291 = vmatpush2.msra.mxu0 0.0
        %292 = vmatprep.subr.mxu0 0.0
        %293 = vmatpush2.msra.mxu0 0.0
        %294 = vmatprep.subr.mxu0 0.0
        %295 = vmatpush2.msra.mxu0 0.0
        %296 = vmatprep.subr.mxu0 0.0
        %297 = vmatpush2.msra.mxu0 0.0
        %298 = vmatprep.subr.mxu0 0.0
        %299 = vmatpush2.msra.mxu0 0.0
        %300 = vmatprep.mubr.f32.mxu0 0.0
        %301 = vmatmul.mubr.f32.gmra.mxu0 %v234
        %v302 = vpop.f32.mrf.mxu0
        %v303 = vadd.f32 %v230, %v302
        %v304 = vpop.f32.mrf.mxu0
        %305 = vdwg.mxu0
        %v306 = vmul.f32 %v303, 0.5
        %v307 = vmul.f32 %v303, 0.70710677
        %v308 = verf.f32.pop %v307
        %v309 = vadd.f32 %v308, 1.0
        %v310 = vmul.f32 %v306, %v309
        %v311 = vld [vmem:[%s3] sm:$0xff]
        %v312 = vld [vmem:[%s3 + $0x8] sm:$0xff]
        %v313 = vld [vmem:[%s3 + $0x10] sm:$0xff]
        %v314 = vld [vmem:[%s3 + $0x18] sm:$0xff]
        %v315 = vld [vmem:[%s3 + $0x20] sm:$0xff]
        %v316 = vld [vmem:[%s3 + $0x28] sm:$0xff]
        %v317 = vld [vmem:[%s3 + $0x30] sm:$0xff]
        %v318 = vld [vmem:[%s3 + $0x38] sm:$0xff]
        %v319 = vld [vmem:[%s4] sm:$0x1]
        %v321 = vlaneseq
        %v322 = vshrl.u32 %v321, 7
        %v323 = vsub.s32 0, %v322
        %v324 = vrot.slane %v319, %v323
        %vm326 = vcmask 523264
        %v328 = vsel %vm326, %v310, 0
        %330 = vmatprep.subr.mxu0 0.0
        %331 = vmatpush1.msra.mxu0 0.0
        %332 = vmatprep.subr.mxu0 0.0
        %333 = vmatpush1.msra.mxu0 0.0
        %334 = vmatprep.subr.mxu0 0.0
        %335 = vmatpush1.msra.mxu0 0.0
        %336 = vmatprep.subr.mxu0 0.0
        %337 = vmatpush1.msra.mxu0 0.0
        %338 = vmatprep.subr.mxu0 0.0
        %339 = vmatpush1.msra.mxu0 0.0
        %340 = vmatprep.subr.mxu0 0.0
        %341 = vmatpush1.msra.mxu0 0.0
        %342 = vmatprep.subr.mxu0 0.0
        %343 = vmatpush1.msra.mxu0 0.0
        %344 = vmatprep.subr.mxu0 0.0
        %345 = vmatpush1.msra.mxu0 0.0
        %346 = vmatprep.subr.mxu0 0.0
        %347 = vmatpush1.msra.mxu0 %v318
        %348 = vmatprep.subr.mxu0 0.0
        %349 = vmatpush1.msra.mxu0 %v317
        %350 = vmatprep.subr.mxu0 0.0
        %351 = vmatpush1.msra.mxu0 %v316
        %352 = vmatprep.subr.mxu0 0.0
        %353 = vmatpush1.msra.mxu0 %v315
        %354 = vmatprep.subr.mxu0 0.0
        %355 = vmatpush1.msra.mxu0 %v314
        %356 = vmatprep.subr.mxu0 0.0
        %357 = vmatpush1.msra.mxu0 %v313
        %358 = vmatprep.subr.mxu0 0.0
        %359 = vmatpush1.msra.mxu0 %v312
        %360 = vmatprep.subr.mxu0 0.0
        %361 = vmatpush1.msra.mxu0 %v311
        %362 = vmatprep.subr.mxu0 0.0
        %363 = vmatpush2.msra.mxu0 0.0
        %364 = vmatprep.subr.mxu0 0.0
        %365 = vmatpush2.msra.mxu0 0.0
        %366 = vmatprep.subr.mxu0 0.0
        %367 = vmatpush2.msra.mxu0 0.0
        %368 = vmatprep.subr.mxu0 0.0
        %369 = vmatpush2.msra.mxu0 0.0
        %370 = vmatprep.subr.mxu0 0.0
        %371 = vmatpush2.msra.mxu0 0.0
        %372 = vmatprep.subr.mxu0 0.0
        %373 = vmatpush2.msra.mxu0 0.0
        %374 = vmatprep.subr.mxu0 0.0
        %375 = vmatpush2.msra.mxu0 0.0
        %376 = vmatprep.subr.mxu0 0.0
        %377 = vmatpush2.msra.mxu0 0.0
        %378 = vmatprep.subr.mxu0 0.0
        %379 = vmatpush2.msra.mxu0 0.0
        %380 = vmatprep.subr.mxu0 0.0
        %381 = vmatpush2.msra.mxu0 0.0
        %382 = vmatprep.subr.mxu0 0.0
        %383 = vmatpush2.msra.mxu0 0.0
        %384 = vmatprep.subr.mxu0 0.0
        %385 = vmatpush2.msra.mxu0 0.0
        %386 = vmatprep.subr.mxu0 0.0
        %387 = vmatpush2.msra.mxu0 0.0
        %388 = vmatprep.subr.mxu0 0.0
        %389 = vmatpush2.msra.mxu0 0.0
        %390 = vmatprep.subr.mxu0 0.0
        %391 = vmatpush2.msra.mxu0 0.0
        %392 = vmatprep.subr.mxu0 0.0
        %393 = vmatpush2.msra.mxu0 0.0
        %394 = vmatprep.mubr.f32.mxu0 0.0
        %395 = vmatmul.mubr.f32.gmra.mxu0 %v328
        %v396 = vpop.f32.mrf.mxu0
        %v397 = vadd.f32 %v324, %v396
        %v398 = vpop.f32.mrf.mxu0
        %399 = vdwg.mxu0
        %400 = vst.msk [vmem:[%s215] sm:$0xff] %vm232, %v397
        %s401 = sand.u32 %s137, 1
        %s402 = scalar_lea.sflag [#allocation3], %s401
        %s403 = sand.u32 %s137, 1
        %s404 = smul.addr %s403, 8
        %s405 = scalar_lea.vmem [#allocation2], %s404
        // Predicated region
        $region41: #{tpu_custom_call.1} parent=39 // pred_check
          %p406 = pneg %p147
        $region42: #{tpu_custom_call.1} parent=39 // pred_check_branch
          %408 = sbr.rel (%p406) target = $region44
        $region43: #{tpu_custom_call.1} parent=39 // pred_region
          %s410 = ssub.s32 128, 128
          %411 = vsyncadd %s402, %s410
          %s412 = smul.addr %s19, 128
          %s413 = scalar_lea.hbm %s5, %s412
          %s415 = sshll.u32 %s405, 4
          %s416 = int_to_ptr.vmem [resolvable:$true] %s415
          %418 = dma.vmem_to_hbm [thread:$0]  %s416, 128, %s413, %s402
        $region44: #{tpu_custom_call.1} parent=39 // pred_fallthru
          _
      $region40: #{tpu_custom_call.1} parent=5 // pred_fallthru
        _
      %p419 = scmp.le.s32.totalorder 2, %s14
      // Predicated region
      $region45: #{tpu_custom_call.1} parent=5 // pred_check
        %p420 = pneg %p419
      $region46: #{tpu_custom_call.1} parent=5 // pred_check_branch
        %422 = sbr.rel (%p420) target = $region48
      $region47: #{tpu_custom_call.1} parent=5 // pred_region
        %s423 = ssub.s32 %s14, 2
        // Predicated region
        $region49: #{tpu_custom_call.1} parent=47 // pred_check
          %p424 = pneg %p153
        $region50: #{tpu_custom_call.1} parent=47 // pred_check_branch
          %426 = sbr.rel (%p424) target = $region52
        $region51: #{tpu_custom_call.1} parent=47 // pred_region
          %s427 = sand.u32 %s138, 1
          %s428 = scalar_lea.sflag [#allocation3], %s427
          %s429 = sand.u32 %s138, 1
          %s430 = smul.addr %s429, 8
          %s431 = scalar_lea.vmem [#allocation2], %s430
          %432 = dma.done %s428, 128
        $region52: #{tpu_custom_call.1} parent=47 // pred_fallthru
          _
      $region48: #{tpu_custom_call.1} parent=5 // pred_fallthru
        _
    $region6: #{tpu_custom_call.1} parent=1 // loop_footer
      %s18 = sadd.s32 1, %s14
    $region7: #{tpu_custom_call.1} parent=1 // loop_footer_branch
      %13 = sbr.rel target = $region3
    $region8: #{tpu_custom_call.1} parent=1 // loop_exit
      _
    %433 = vsyncpa [#allocation3], 1
    %s434 = scalar_lea.sflag [#allocation3], 1
    %435 = vsyncpa %s434, 1

</llo_original>
